<compile_context>
chip_gen: v5e
topology: v5e:2x2
jax: 0.10.0
libtpu: 0.0.40
codegen_flags: <defaults>
</compile_context>

<pallas_src>
import math
import functools

import jax
import jax.numpy as jnp
from jax.experimental import pallas as pl
from jax.experimental.pallas import tpu as pltpu


# ---------------------------------------------------------------------------
# Parameter / buffer construction (plain JAX glue, deterministic)
# ---------------------------------------------------------------------------
def make_positional_encoding_table(d_model: int, max_len: int = 5000) -> jnp.ndarray:
    """Sinusoidal table exactly like the PyTorch __init__: returns [max_len, 1, D]."""
    position = jnp.arange(0, max_len, dtype=jnp.float32)[:, None]            # [L, 1]
    div_term = jnp.exp(
        jnp.arange(0, d_model, 2, dtype=jnp.float32) * (-math.log(10000.0) / d_model)
    )                                                                          # [D/2]
    pe = jnp.zeros((max_len, d_model), dtype=jnp.float32)
    pe = pe.at[:, 0::2].set(jnp.sin(position * div_term))
    pe = pe.at[:, 1::2].set(jnp.cos(position * div_term))
    return pe[:, None, :]                                                      # [L, 1, D]


# ---------------------------------------------------------------------------
# Kernels (blocks are 2-D, lane-dense: x/out [TS, B*D], pe [TS, D])
# ---------------------------------------------------------------------------
def _pe_add_kernel(x_ref, pe_ref, o_ref, *, batch, d):
    # Broadcast pe across the batch with B static lane-slice adds: static ref
    # slices are free views -> no block-sized temporary, no cross-lane shuffle.
    pe = pe_ref[...]
    for b in range(batch):
        sl = slice(b * d, (b + 1) * d)
        o_ref[:, sl] = x_ref[:, sl] + pe


def _pe_add_dropout_kernel(x_ref, pe_ref, bits_ref, o_ref, *, batch, d,
                           threshold, scale):
    # keep element iff its uniform uint32 draw >= round(p * 2^32)  (drop prob p)
    thr = jnp.uint32(threshold)
    sc = jnp.float32(scale)                 # inverted-dropout scale, f32
    pe = pe_ref[...]
    for b in range(batch):
        sl = slice(b * d, (b + 1) * d)
        y = x_ref[:, sl] + pe               # stays in input dtype
        kept = (y * sc).astype(o_ref.dtype)  # scale in f32, single cast
        o_ref[:, sl] = jnp.where(bits_ref[:, sl] >= thr, kept,
                                 jnp.zeros_like(kept))


# ---------------------------------------------------------------------------
# Tiling heuristics
# ---------------------------------------------------------------------------
def _sublane_for(dtype) -> int:
    """Native sublane packing: 8 rows for 4-byte, 16 for 2-byte, 32 for 1-byte."""
    itemsize = jnp.dtype(dtype).itemsize
    if itemsize >= 4:
        return 8
    if itemsize == 2:
        return 16
    return 32


def _generation_params():
    """(target_block_bytes, num_tensorcores) per TPU generation; safe fallback."""
    try:
        dev = jax.devices()[0]
        if dev.platform != "tpu":
            return 2 << 20, 1
        kind = getattr(dev, "device_kind", "").lower()
        if "v5 lite" in kind or "v5e" in kind or "v5lite" in kind:
            return 2 << 20, 1       # v5e: 16 MiB scoped-VMEM default -> 2 MiB blocks
        if "v7" in kind:
            return 4 << 20, 2       # v7x: 2 TensorCores/chip share the parallel grid
        return 4 << 20, 1           # v6e etc.: ~86% HBM roofline at 4 MiB tiles
    except Exception:
        return 2 << 20, 1


def _choose_block_rows(seq_len, row_bytes, sublane, target_block_bytes, num_cores):
    rows = max(1, target_block_bytes // max(row_bytes, 1))
    if num_cores > 1 and seq_len >= 2 * num_cores * sublane:
        # Guarantee >= 2 tiles per TensorCore so the second core isn't idle.
        per_core = max(sublane, (seq_len // (2 * num_cores)) // sublane * sublane)
        rows = min(rows, per_core)
    if rows >= seq_len:
        return seq_len                       # whole axis: exempt from sublane rule
    return max(sublane, (rows // sublane) * sublane)


# ---------------------------------------------------------------------------
# Wrapper
# ---------------------------------------------------------------------------
def positional_encoding(x, pe, *, p: float = 0.1, training: bool = False,
                        rng_key=None, block_rows=None):
    """x: [S, B, D], pe: [max_len, 1, D] -> [S, B, D]."""
    S, B, D = x.shape
    if S > pe.shape[0]:
        raise ValueError(
            f"sequence length {S} exceeds positional table max_len {pe.shape[0]}")

    if training and p >= 1.0:                # torch semantics: everything dropped
        return jnp.zeros_like(x)

    # Lane-dense 2-D views (free reshapes; no extra HBM traffic).
    x2d = x.reshape(S, B * D)
    pe2d = pe[:S, 0, :].astype(x.dtype)      # [S, D] — read only S*D elements

    sublane = _sublane_for(x.dtype)
    target_bytes, num_cores = _generation_params()
    if block_rows is None:
        block_rows = _choose_block_rows(S, B * D * x.dtype.itemsize, sublane,
                                        target_bytes, num_cores)
    block_rows = min(int(block_rows), S)
    if block_rows < S and block_rows % sublane != 0:
        block_rows = max(sublane, (block_rows // sublane) * sublane)
    grid = (pl.cdiv(S, block_rows),)

    x_spec = pl.BlockSpec((block_rows, B * D), lambda i: (i, 0))
    pe_spec = pl.BlockSpec((block_rows, D), lambda i: (i, 0))
    out_shape = jax.ShapeDtypeStruct((S, B * D), x.dtype)
    cparams = pltpu.CompilerParams(dimension_semantics=("parallel",))

    if (not training) or p == 0.0:
        # Eval mode: dropout is identity -> tiled broadcast add.
        # (input_output_aliases={0: 0} could drop the extra HBM output buffer
        #  when the caller no longer needs x; omitted so x stays valid.)
        out2d = pl.pallas_call(
            functools.partial(_pe_add_kernel, batch=B, d=D),
            out_shape=out_shape,
            grid=grid,
            in_specs=[x_spec, pe_spec],
            out_specs=x_spec,
            compiler_params=cparams,
        )(x2d, pe2d)
        return out2d.reshape(S, B, D)

    # Training mode: fused add + inverted dropout.  Random bits are drawn in
    # the wrapper (portable; no TPU-only PRNG primitives) and streamed through
    # the same double-buffered pipeline as x.
    if rng_key is None:
        rng_key = jax.random.PRNGKey(0)
    bits = jax.random.bits(rng_key, (S, B * D), dtype=jnp.uint32)
    threshold = min(int(round(float(p) * (1 << 32))), (1 << 32) - 1)
    scale = 1.0 / (1.0 - float(p))
    bits_spec = pl.BlockSpec((block_rows, B * D), lambda i: (i, 0))

    out2d = pl.pallas_call(
        functools.partial(_pe_add_dropout_kernel, batch=B, d=D,
                          threshold=threshold, scale=scale),
        out_shape=out_shape,
        grid=grid,
        in_specs=[x_spec, pe_spec, bits_spec],
        out_specs=x_spec,
        compiler_params=cparams,
    )(x2d, pe2d, bits)
    return out2d.reshape(S, B, D)


# ---------------------------------------------------------------------------
# Main
# ---------------------------------------------------------------------------
if __name__ == "__main__":
    S, B, D = 32, 2, 32          # [sequence length, batch size, embed dim]
    MAX_LEN = 64

    key = jax.random.PRNGKey(0)
    kx, kdrop = jax.random.split(key)
    x = jax.random.normal(kx, (S, B, D), dtype=jnp.float32)
    pe = make_positional_encoding_table(D, MAX_LEN)          # [MAX_LEN, 1, D]

    ref = x + pe[:S]             # pure-JAX reference

    # --- Eval mode, default sizing (single whole-array block at this size) ---
    out = positional_encoding(x, pe, p=0.1, training=False)
    out = jax.block_until_ready(out)
    assert out.shape == (S, B, D) and out.dtype == x.dtype
    assert jnp.allclose(out, ref, atol=1e-6, rtol=1e-6), "eval-mode mismatch"

    # --- Eval mode, forced multi-tile grid (tiling correctness check) --------
    out_tiled = positional_encoding(x, pe, p=0.1, training=False, block_rows=8)
    out_tiled = jax.block_until_ready(out_tiled)
    assert jnp.allclose(out_tiled, ref, atol=1e-6, rtol=1e-6), "tiled eval mismatch"

    # --- Training mode (fused add + inverted dropout) ------------------------
    p = 0.1
    out_tr = positional_encoding(x, pe, p=p, training=True, rng_key=kdrop)
    out_tr = jax.block_until_ready(out_tr)
    assert out_tr.shape == (S, B, D) and out_tr.dtype == x.dtype

    # Exact reference using the same uint32 stream / threshold / f32 scale.
    bits_ref = jax.random.bits(kdrop, (S, B * D), dtype=jnp.uint32).reshape(S, B, D)
    thr_ref = jnp.uint32(min(int(round(p * (1 << 32))), (1 << 32) - 1))
    ref_tr = jnp.where(bits_ref >= thr_ref,
                       (ref * jnp.float32(1.0 / (1.0 - p))).astype(x.dtype),
                       jnp.zeros_like(ref))
    assert jnp.allclose(out_tr, ref_tr, atol=1e-6, rtol=1e-6), "dropout mismatch"
    n_zero = int(jnp.sum(out_tr == 0.0))
    assert 0 < n_zero < out_tr.size, "dropout mask looks degenerate"

    print("KERNEL_OK")
</pallas_src>

<mosaic_0001>
module attributes {stable_mosaic.version = 11 : i64} {
  func.func @_pe_add_kernel(%arg0: i32, %arg1: memref<32x64xf32, #tpu.memory_space<vmem>>, %arg2: memref<32x32xf32, #tpu.memory_space<vmem>>, %arg3: memref<32x64xf32, #tpu.memory_space<vmem>>) attributes {dimension_semantics = [#tpu.dimension_semantics<parallel>], iteration_bounds = array<i64: 1>, scalar_prefetch = 0 : i64, scratch_operands = 0 : i64, tpu.core_type = #tpu.core_type<tc>, window_params = [{transform_indices = @transform_0, window_bounds = array<i64: 32, 64>}, {transform_indices = @transform_1, window_bounds = array<i64: 32, 32>}, {transform_indices = @transform_2, window_bounds = array<i64: 32, 64>}]} {
    %c0 = arith.constant 0 : index
    %c0_0 = arith.constant 0 : index
    %0 = vector.load %arg2[%c0, %c0_0] : memref<32x32xf32, #tpu.memory_space<vmem>>, vector<32x32xf32>
    %c0_1 = arith.constant 0 : index
    %c0_2 = arith.constant 0 : index
    %1 = vector.load %arg1[%c0_1, %c0_2] : memref<32x64xf32, #tpu.memory_space<vmem>>, vector<32x32xf32>
    %2 = arith.addf %1, %0 : vector<32x32xf32>
    %c0_3 = arith.constant 0 : index
    %c0_4 = arith.constant 0 : index
    %3 = vector.load %arg3[%c0_3, %c0_4] : memref<32x64xf32, #tpu.memory_space<vmem>>, vector<32x32xf32>
    tpu.vector_store %arg3[%c0_3, %c0_4], %2 {strides = array<i32>} : memref<32x64xf32, #tpu.memory_space<vmem>>, vector<32x32xf32>,
    %c0_5 = arith.constant 0 : index
    %c32 = arith.constant 32 : index
    %4 = vector.load %arg1[%c0_5, %c32] : memref<32x64xf32, #tpu.memory_space<vmem>>, vector<32x32xf32>
    %5 = arith.addf %4, %0 : vector<32x32xf32>
    %c0_6 = arith.constant 0 : index
    %c32_7 = arith.constant 32 : index
    %6 = vector.load %arg3[%c0_6, %c32_7] : memref<32x64xf32, #tpu.memory_space<vmem>>, vector<32x32xf32>
    tpu.vector_store %arg3[%c0_6, %c32_7], %5 {strides = array<i32>} : memref<32x64xf32, #tpu.memory_space<vmem>>, vector<32x32xf32>,
    return
  }
  func.func @transform_0(%arg0: i32) -> (i32, i32) {
    %c0_i32 = arith.constant 0 : i32
    %c0_i32_0 = arith.constant 0 : i32
    return %arg0, %c0_i32 : i32, i32
  }
  func.func @transform_1(%arg0: i32) -> (i32, i32) {
    %c0_i32 = arith.constant 0 : i32
    %c0_i32_0 = arith.constant 0 : i32
    return %arg0, %c0_i32 : i32, i32
  }
  func.func @transform_2(%arg0: i32) -> (i32, i32) {
    %c0_i32 = arith.constant 0 : i32
    %c0_i32_0 = arith.constant 0 : i32
    return %arg0, %c0_i32 : i32, i32
  }
}

</mosaic_0001>

<llo_original>
// kernel: tpu_custom_call.1
$region0: #{tpu_custom_call.1}
  #allocation0 [shape = 'u32[]', space=smem, size = 0x4, offset = 0x4, fixed_abs, tag = 'smem constant byte address 0x4 - core index']
  #allocation1 [shape = 'u32[72,128]{1,0:T(1,128)}', space=vmem, size = 0x9000, scoped, tag = 'internal scratch']
  %s0 = inlined_call_operand.hbm [shape: f32[32,64], index: 0, kind: input, shape index: {}]
  %s1 = inlined_call_operand.hbm [shape: f32[32,32], index: 1, kind: input, shape index: {}]
  %s2 = inlined_call_operand.hbm [shape: f32[32,64], index: 2, kind: output, shape index: {}]
  %s3 = sld [smem:[#allocation0]]
  $region26: #{tpu_custom_call.1} parent=0
    _
  %s5 = ssub.s32 1, %s3
  %s6 = scalar_select 0, %s5, %s3
  $region1: #{tpu_custom_call.1} parent=0
    #allocation2 [shape = 'u8[16384]{0}', space=vmem, size = 0x4000, scoped, tag = 'input window, operand 0, single buffered']
    #allocation3 [shape = 's32[1]{0}', space=sflag, size = 0x4, scoped, tag = 'scoped memory for tpu_custom_call.1']
    #allocation4 [shape = 's32[1]{0}', space=sflag, size = 0x4, scoped, tag = 'scoped memory for tpu_custom_call.1']
    #allocation5 [shape = 'u8[16384]{0}', space=vmem, size = 0x4000, scoped, tag = 'input window, operand 1, single buffered']
    #allocation6 [shape = 's32[1]{0}', space=sflag, size = 0x4, scoped, tag = 'scoped memory for tpu_custom_call.1']
    #allocation7 [shape = 'u8[16384]{0}', space=vmem, size = 0x4000, scoped, tag = 'output window, operand 0, single buffered']
    %7 = vsyncpa [#allocation3], 0
    %8 = vsyncpa [#allocation6], 0
    %9 = vsyncpa [#allocation4], 0
    // Predicated region
    $region2: #{tpu_custom_call.1} parent=1 // pred_check
      _
    $region3: #{tpu_custom_call.1} parent=1 // pred_check_branch
      %11 = sbr.rel (0) target = $region5
    $region4: #{tpu_custom_call.1} parent=1 // pred_region
      %13 = vsyncadd [#allocation3], 0
      %s14 = sshll.u32 %s0, 4
      %s15 = int_to_ptr.hbm [resolvable:$true] %s14
      %s16 = sshll.u32 [#allocation2], 4
      %s17 = int_to_ptr.vmem [resolvable:$true] %s16
      %22 = dma.hbm_to_vmem [thread:$0]  %s15, 512, %s17, [#allocation3], 128, 128, 8
    $region5: #{tpu_custom_call.1} parent=1 // pred_fallthru
      _
    // Predicated region
    $region6: #{tpu_custom_call.1} parent=1 // pred_check
      _
    $region7: #{tpu_custom_call.1} parent=1 // pred_check_branch
      %24 = sbr.rel (0) target = $region9
    $region8: #{tpu_custom_call.1} parent=1 // pred_region
      %26 = vsyncadd [#allocation6], 0
      %s27 = sshll.u32 %s1, 4
      %s28 = int_to_ptr.hbm [resolvable:$true] %s27
      %s29 = sshll.u32 [#allocation5], 4
      %s30 = int_to_ptr.vmem [resolvable:$true] %s29
      %35 = dma.hbm_to_vmem [thread:$0]  %s28, 512, %s30, [#allocation6], 128, 128, 8
    $region9: #{tpu_custom_call.1} parent=1 // pred_fallthru
      _
    // Predicated region
    $region10: #{tpu_custom_call.1} parent=1 // pred_check
      _
    $region11: #{tpu_custom_call.1} parent=1 // pred_check_branch
      %37 = sbr.rel (0) target = $region13
    $region12: #{tpu_custom_call.1} parent=1 // pred_region
      %39 = dma.done [#allocation3], 512
    $region13: #{tpu_custom_call.1} parent=1 // pred_fallthru
      _
    // Predicated region
    $region14: #{tpu_custom_call.1} parent=1 // pred_check
      _
    $region15: #{tpu_custom_call.1} parent=1 // pred_check_branch
      %41 = sbr.rel (0) target = $region17
    $region16: #{tpu_custom_call.1} parent=1 // pred_region
      %43 = dma.done [#allocation6], 512
    $region17: #{tpu_custom_call.1} parent=1 // pred_fallthru
      _
    %v44 = vld [vmem:[#allocation5] sm:$0xff]
    %v45 = vld [vmem:[#allocation5 + $0x8] sm:$0xff]
    %v46 = vld [vmem:[#allocation5 + $0x10] sm:$0xff]
    %v47 = vld [vmem:[#allocation5 + $0x18] sm:$0xff]
    %v48 = vld [vmem:[#allocation2] sm:$0xff]
    %v49 = vld [vmem:[#allocation2 + $0x8] sm:$0xff]
    %v50 = vld [vmem:[#allocation2 + $0x10] sm:$0xff]
    %v51 = vld [vmem:[#allocation2 + $0x18] sm:$0xff]
    %v52 = vadd.f32 %v48, %v44
    %v53 = vadd.f32 %v49, %v45
    %v54 = vadd.f32 %v50, %v46
    %v55 = vadd.f32 %v51, %v47
    %vm56 = vcmask 261120
    %57 = vst.msk [vmem:[#allocation7] sm:$0xff] %vm56, %v52
    %58 = vst.msk [vmem:[#allocation7 + $0x8] sm:$0xff] %vm56, %v53
    %59 = vst.msk [vmem:[#allocation7 + $0x10] sm:$0xff] %vm56, %v54
    %60 = vst.msk [vmem:[#allocation7 + $0x18] sm:$0xff] %vm56, %v55
    %v61 = vld [vmem:[#allocation2] sm:$0xff]
    %v62 = vld [vmem:[#allocation2 + $0x8] sm:$0xff]
    %v63 = vld [vmem:[#allocation2 + $0x10] sm:$0xff]
    %v64 = vld [vmem:[#allocation2 + $0x18] sm:$0xff]
    %69 = vrot.lane.b32.xlu0 %v44, 32
    %v70 = vpop.permute.xlu0 %69
    %71 = vrot.lane.b32.xlu0 %v45, 32
    %v72 = vpop.permute.xlu0 %71
    %73 = vrot.lane.b32.xlu0 %v46, 32
    %v74 = vpop.permute.xlu0 %73
    %75 = vrot.lane.b32.xlu0 %v47, 32
    %v76 = vpop.permute.xlu0 %75
    %v81 = vadd.f32 %v61, %v70
    %v82 = vadd.f32 %v62, %v72
    %v83 = vadd.f32 %v63, %v74
    %v84 = vadd.f32 %v64, %v76
    %vm85 = vcmask 523520
    %86 = vst.msk [vmem:[#allocation7] sm:$0xff] %vm85, %v81
    %87 = vst.msk [vmem:[#allocation7 + $0x8] sm:$0xff] %vm85, %v82
    %88 = vst.msk [vmem:[#allocation7 + $0x10] sm:$0xff] %vm85, %v83
    %89 = vst.msk [vmem:[#allocation7 + $0x18] sm:$0xff] %vm85, %v84
    // Predicated region
    $region18: #{tpu_custom_call.1} parent=1 // pred_check
      _
    $region19: #{tpu_custom_call.1} parent=1 // pred_check_branch
      %91 = sbr.rel (0) target = $region21
    $region20: #{tpu_custom_call.1} parent=1 // pred_region
      %93 = vsyncadd [#allocation4], 0
      %s94 = sshll.u32 [#allocation7], 4
      %s95 = int_to_ptr.vmem [resolvable:$true] %s94
      %s96 = sshll.u32 %s2, 4
      %s97 = int_to_ptr.hbm [resolvable:$true] %s96
      %102 = dma.vmem_to_hbm [thread:$0]  %s95, 512, %s97, [#allocation4], 128, 128, 8
    $region21: #{tpu_custom_call.1} parent=1 // pred_fallthru
      _
    // Predicated region
    $region22: #{tpu_custom_call.1} parent=1 // pred_check
      _
    $region23: #{tpu_custom_call.1} parent=1 // pred_check_branch
      %104 = sbr.rel (0) target = $region25
    $region24: #{tpu_custom_call.1} parent=1 // pred_region
      %106 = dma.done [#allocation4], 512
    $region25: #{tpu_custom_call.1} parent=1 // pred_fallthru
      _
    %107 = vsyncpa [#allocation3], 1
    %108 = vsyncpa [#allocation6], 1
    %109 = vsyncpa [#allocation4], 1

</llo_original>
